<compile_context>
chip_gen: v5e
topology: v5e:2x2
jax: 0.10.0
libtpu: 0.0.40
codegen_flags: <defaults>
</compile_context>

<pallas_src>
import functools

import jax
import jax.numpy as jnp
from jax.experimental import pallas as pl
from jax.experimental.pallas import tpu as pltpu


def _round_up(x, m):
    return ((x + m - 1) // m) * m


def _largest_aligned_divisor(total, cap, align=128):
    """Largest multiple of `align` that divides `total` and is <= cap.

    `total` is always a multiple of `align`, so `align` is a valid fallback.
    """
    cap = max(align, min(cap, total))
    cap = (cap // align) * align
    for cand in range(cap, align - 1, -align):
        if total % cand == 0:
            return cand
    return align


def _tpu_vmem_bytes():
    """Best-effort VMEM capacity query; conservative (v7x-sized) fallback."""
    try:
        return int(pltpu.get_tpu_info().vmem_capacity_bytes)
    except Exception:
        return 64 * 1024 * 1024


def _dan_kernel(x_ref, w_ref, b_ref, o_ref, acc_ref):
    """One (i, j, k) grid step of sigmoid(x @ W + b).

    i: batch tile, j: output-feature tile, k: input-feature (reduction) tile.
    Bias is folded into the f32 accumulator init; epilogue applies sigmoid
    with the divide pushed onto the EUP via pl.reciprocal(approx=True).
    """
    k = pl.program_id(2)

    @pl.when(k == 0)
    def _():
        acc_ref[...] = jnp.broadcast_to(
            b_ref[...].astype(jnp.float32), acc_ref.shape
        )

    # Cast x to the weight dtype (bf16) so the MXU runs a native bf16 pass;
    # accumulation stays f32.
    acc_ref[...] += jnp.dot(
        x_ref[...].astype(w_ref.dtype),
        w_ref[...],
        preferred_element_type=jnp.float32,
    )

    @pl.when(k == pl.num_programs(2) - 1)
    def _():
        acc = acc_ref[...]
        o_ref[...] = pl.reciprocal(
            1.0 + jnp.exp(-acc), approx=True
        ).astype(o_ref.dtype)


def choose_tiles(batch, d_in_padded, d_out_padded):
    """Pick (tm, tn, tk, vmem_limit).  d_in_padded/d_out_padded must already
    be multiples of 128 (see pad_dan_params); tn/tk are chosen as divisors of
    them so no extra weight rows/cols are ever streamed.

    x / out stay f32, so the batch (sublane) rounding of 8 is correct; it
    would have to become 16 if x/out were ever cast to bf16.
    """
    vmem = _tpu_vmem_bytes()
    big_vmem = vmem >= 100 * 1024 * 1024          # v5e / v6e (128 MiB)

    tm_cap = 512 if big_vmem else 256
    tk_cap = 2048 if big_vmem else 1024
    tn_cap = 1024 if big_vmem else 512
    vmem_limit = (64 if big_vmem else 32) * 1024 * 1024

    if batch <= tm_cap:
        # Whole batch in one i-block -> W is streamed from HBM exactly once.
        tm = _round_up(max(batch, 1), 8)
        i_blocks = 1
    else:
        tm = tm_cap
        i_blocks = pl.cdiv(batch, tm)

    # v7x has 2 TensorCores: if the i axis collapses, split the j axis so both
    # cores get "parallel" work (harmless on single-TC generations).
    if (not big_vmem) and i_blocks == 1 and d_out_padded >= 256:
        tn_cap = min(tn_cap, max(128, (d_out_padded // 2) // 128 * 128))

    tk = _largest_aligned_divisor(d_in_padded, tk_cap)
    tn = _largest_aligned_divisor(d_out_padded, tn_cap)
    return tm, tn, tk, vmem_limit


def pad_dan_params(w, b, *, weight_dtype=jnp.bfloat16):
    """Pad parameters ONCE (outside the jitted forward) to (.,128) multiples
    only, and cast W to its streaming dtype (bf16 by default)."""
    d_in, d_out = w.shape
    dip = _round_up(d_in, 128)
    dop = _round_up(d_out, 128)
    wp = jnp.pad(w, ((0, dip - d_in), (0, dop - d_out))).astype(weight_dtype)
    bp = jnp.pad(b, (0, dop - d_out)).reshape(1, dop).astype(jnp.float32)
    return wp, bp


@functools.partial(
    jax.jit, static_argnames=("d_out", "tm", "tn", "tk", "vmem_limit")
)
def dan_forward(x, wp, bp, *, d_out, tm, tn, tk,
                vmem_limit=32 * 1024 * 1024):
    """x: [B, D_in] f32; wp: [Dip, Dop] pre-padded (bf16); bp: [1, Dop] f32.

    Returns sigmoid(x @ W + b) with shape [B, d_out] in x.dtype.
    """
    B, d_in = x.shape
    dip, dop = wp.shape

    Bp = _round_up(B, tm)
    if Bp != B or dip != d_in:
        # Only x (tiny vs W) is padded per call; zero padding is benign.
        xp = jnp.pad(x, ((0, Bp - B), (0, dip - d_in)))
    else:
        xp = x

    grid = (Bp // tm, dop // tn, dip // tk)

    # Triple-buffer the W stream only when the reduction loop is long enough
    # for it to matter; otherwise keep the default double buffer.
    if grid[2] >= 3:
        w_spec = pl.BlockSpec(
            (tk, tn), lambda i, j, k: (k, j), pipeline_mode=pl.Buffered(3)
        )
    else:
        w_spec = pl.BlockSpec((tk, tn), lambda i, j, k: (k, j))

    out = pl.pallas_call(
        _dan_kernel,
        out_shape=jax.ShapeDtypeStruct((Bp, dop), x.dtype),
        grid_spec=pltpu.PrefetchScalarGridSpec(
            num_scalar_prefetch=0,
            grid=grid,
            in_specs=[
                pl.BlockSpec((tm, tk), lambda i, j, k: (i, k)),   # x tile
                w_spec,                                           # W tile
                pl.BlockSpec((1, tn), lambda i, j, k: (0, j)),    # bias tile
            ],
            out_specs=pl.BlockSpec((tm, tn), lambda i, j, k: (i, j)),
            scratch_shapes=[pltpu.VMEM((tm, tn), jnp.float32)],
        ),
        compiler_params=pltpu.CompilerParams(
            dimension_semantics=("parallel", "parallel", "arbitrary"),
            vmem_limit_bytes=vmem_limit,
        ),
    )(xp, wp, bp)

    if Bp != B or dop != d_out:
        # Padded rows/cols hold sigmoid(bias) ~= 0.5 garbage -> slice them off.
        out = out[:B, :d_out]
    return out


def init_dan_params(key, total_locs):
    """Matches DAN.weight_init(): all params ~ U(-0.05, 0.05)."""
    kw, kb = jax.random.split(key)
    # PyTorch Linear weight is [out, in]; store transposed [in, out] for x @ W.
    w = jax.random.uniform(kw, (total_locs, total_locs), jnp.float32, -0.05, 0.05)
    b = jax.random.uniform(kb, (total_locs,), jnp.float32, -0.05, 0.05)
    return w, b


if __name__ == "__main__":
    key = jax.random.PRNGKey(0)
    k_x, k_p = jax.random.split(key)

    total_locs = 128
    batch = 8

    x = jax.random.normal(k_x, (batch, total_locs), jnp.float32)
    w, b = init_dan_params(k_p, total_locs)

    # One-time parameter padding/cast + generation-aware tile selection.
    wp, bp = pad_dan_params(w, b, weight_dtype=jnp.bfloat16)
    dip, dop = wp.shape
    tm, tn, tk, vmem_limit = choose_tiles(batch, dip, dop)

    out = dan_forward(
        x, wp, bp, d_out=total_locs, tm=tm, tn=tn, tk=tk,
        vmem_limit=vmem_limit,
    )
    out = jax.block_until_ready(out)

    # Reference check in plain JAX (sigmoid(x @ W + b), full f32).  The kernel
    # uses bf16 weights + approx reciprocal, hence the loose tolerance.
    ref = jax.nn.sigmoid(x @ w + b)
    assert out.shape == (batch, total_locs)
    assert jnp.allclose(out, ref, atol=2e-2, rtol=2e-2), "mismatch vs reference"

    print("KERNEL_OK")
</pallas_src>

<mosaic_0001>
module attributes {stable_mosaic.version = 11 : i64} {
  func.func @_dan_kernel(%arg0: i32, %arg1: i32, %arg2: i32, %arg3: memref<8x128xf32, #tpu.memory_space<vmem>>, %arg4: memref<128x128xbf16, #tpu.memory_space<vmem>>, %arg5: memref<1x128xf32, #tpu.memory_space<vmem>>, %arg6: memref<8x128xf32, #tpu.memory_space<vmem>>, %arg7: memref<8x128xf32, #tpu.memory_space<vmem>>) attributes {dimension_semantics = [#tpu.dimension_semantics<parallel>, #tpu.dimension_semantics<parallel>, #tpu.dimension_semantics<arbitrary>], iteration_bounds = array<i64: 1, 1, 1>, scalar_prefetch = 0 : i64, scratch_operands = 1 : i64, tpu.core_type = #tpu.core_type<tc>, window_params = [{transform_indices = @transform_0, window_bounds = array<i64: 8, 128>}, {transform_indices = @transform_1, window_bounds = array<i64: 128, 128>}, {transform_indices = @transform_2, window_bounds = array<i64: 1, 128>}, {transform_indices = @transform_3, window_bounds = array<i64: 8, 128>}]} {
    %c0_i32 = arith.constant 0 : i32
    %0 = arith.cmpi eq, %arg2, %c0_i32 : i32
    %1 = arith.extui %0 : i1 to i32
    %c0_i32_0 = arith.constant 0 : i32
    %2 = arith.cmpi ne, %1, %c0_i32_0 : i32
    scf.if %2 {
      %c0_10 = arith.constant 0 : index
      %c0_11 = arith.constant 0 : index
      %13 = vector.load %arg5[%c0_10, %c0_11] : memref<1x128xf32, #tpu.memory_space<vmem>>, vector<1x128xf32>
      %14 = vector.shape_cast %13 : vector<1x128xf32> to vector<1x128xf32>
      %15 = vector.broadcast %14 : vector<1x128xf32> to vector<8x128xf32>
      %c0_12 = arith.constant 0 : index
      %c0_13 = arith.constant 0 : index
      %16 = vector.load %arg7[%c0_12, %c0_13] : memref<8x128xf32, #tpu.memory_space<vmem>>, vector<8x128xf32>
      tpu.vector_store %arg7[%c0_12, %c0_13], %15 {strides = array<i32>} : memref<8x128xf32, #tpu.memory_space<vmem>>, vector<8x128xf32>,
    } else {
    }
    %c0 = arith.constant 0 : index
    %c0_1 = arith.constant 0 : index
    %3 = vector.load %arg7[%c0, %c0_1] : memref<8x128xf32, #tpu.memory_space<vmem>>, vector<8x128xf32>
    %c0_2 = arith.constant 0 : index
    %c0_3 = arith.constant 0 : index
    %4 = vector.load %arg3[%c0_2, %c0_3] : memref<8x128xf32, #tpu.memory_space<vmem>>, vector<8x128xf32>
    %5 = arith.truncf %4 : vector<8x128xf32> to vector<8x128xbf16>
    %c0_4 = arith.constant 0 : index
    %c0_5 = arith.constant 0 : index
    %6 = vector.load %arg4[%c0_4, %c0_5] : memref<128x128xbf16, #tpu.memory_space<vmem>>, vector<128x128xbf16>
    %cst = arith.constant dense<0.000000e+00> : vector<8x128xf32>
    %7 = tpu.matmul %5, %6, %cst {dimension_numbers = #tpu.dot_dimension_numbers<[1], [0], [0], [1], [0, 0, 1, 1], [], []>} : vector<8x128xbf16>, vector<128x128xbf16>, vector<8x128xf32> -> vector<8x128xf32>
    %8 = arith.addf %3, %7 : vector<8x128xf32>
    %c0_6 = arith.constant 0 : index
    %c0_7 = arith.constant 0 : index
    %9 = vector.load %arg7[%c0_6, %c0_7] : memref<8x128xf32, #tpu.memory_space<vmem>>, vector<8x128xf32>
    tpu.vector_store %arg7[%c0_6, %c0_7], %8 {strides = array<i32>} : memref<8x128xf32, #tpu.memory_space<vmem>>, vector<8x128xf32>,
    %c0_i32_8 = arith.constant 0 : i32
    %10 = arith.cmpi eq, %arg2, %c0_i32_8 : i32
    %11 = arith.extui %10 : i1 to i32
    %c0_i32_9 = arith.constant 0 : i32
    %12 = arith.cmpi ne, %11, %c0_i32_9 : i32
    scf.if %12 {
      %c0_10 = arith.constant 0 : index
      %c0_11 = arith.constant 0 : index
      %13 = vector.load %arg7[%c0_10, %c0_11] : memref<8x128xf32, #tpu.memory_space<vmem>>, vector<8x128xf32>
      %cst_12 = arith.constant 0.000000e+00 : f32
      %14 = vector.broadcast %cst_12 : f32 to vector<8x128xf32>
      %15 = arith.subf %14, %13 : vector<8x128xf32>
      %16 = math.exp %15 : vector<8x128xf32>
      %cst_13 = arith.constant 1.000000e+00 : f32
      %17 = vector.broadcast %cst_13 : f32 to vector<8x128xf32>
      %18 = arith.addf %17, %16 : vector<8x128xf32>
      %19 = tpu.reciprocal %18 {approx = true} : vector<8x128xf32> -> vector<8x128xf32>
      %c0_14 = arith.constant 0 : index
      %c0_15 = arith.constant 0 : index
      %20 = vector.load %arg6[%c0_14, %c0_15] : memref<8x128xf32, #tpu.memory_space<vmem>>, vector<8x128xf32>
      tpu.vector_store %arg6[%c0_14, %c0_15], %19 {strides = array<i32>} : memref<8x128xf32, #tpu.memory_space<vmem>>, vector<8x128xf32>,
    } else {
    }
    return
  }
  func.func @transform_0(%arg0: i32, %arg1: i32, %arg2: i32) -> (i32, i32) {
    %c0_i32 = arith.constant 0 : i32
    return %arg0, %arg2 : i32, i32
  }
  func.func @transform_1(%arg0: i32, %arg1: i32, %arg2: i32) -> (i32, i32) {
    %c0_i32 = arith.constant 0 : i32
    return %arg2, %arg1 : i32, i32
  }
  func.func @transform_2(%arg0: i32, %arg1: i32, %arg2: i32) -> (i32, i32) {
    %c0_i32 = arith.constant 0 : i32
    %c0_i32_0 = arith.constant 0 : i32
    return %c0_i32, %arg1 : i32, i32
  }
  func.func @transform_3(%arg0: i32, %arg1: i32, %arg2: i32) -> (i32, i32) {
    %c0_i32 = arith.constant 0 : i32
    return %arg0, %arg1 : i32, i32
  }
}

</mosaic_0001>

<llo_original>
// kernel: dan_forward.1
$region0: #{dan_forward.1}
  #allocation0 [shape = 'u32[]', space=smem, size = 0x4, offset = 0x4, fixed_abs, tag = 'smem constant byte address 0x4 - core index']
  #allocation1 [shape = 'u32[72,128]{1,0:T(1,128)}', space=vmem, size = 0x9000, scoped, tag = 'internal scratch']
  #allocation2 [shape = 'f32[8,128]{1,0:T(8,128)}', space=vmem, size = 0x1000, scoped, tag = 'scratch operand']
  %s0 = inlined_call_operand.hbm [shape: f32[8,128], index: 0, kind: input, shape index: {}]
  %s1 = inlined_call_operand.hbm [shape: bf16[128,128], index: 1, kind: input, shape index: {}]
  %s2 = inlined_call_operand.vmem [shape: f32[1,128], index: 2, kind: input, shape index: {}]
  %s3 = inlined_call_operand.hbm [shape: f32[8,128], index: 3, kind: output, shape index: {}]
  %s4 = sld [smem:[#allocation0]]
  $region38: #{dan_forward.1} parent=0
    _
  %s6 = ssub.s32 1, %s4
  %s7 = scalar_select 0, %s6, %s4
  $region1: #{dan_forward.1} parent=0
    #allocation3 [shape = 'u8[4096]{0}', space=vmem, size = 0x1000, scoped, tag = 'input window, operand 0, single buffered']
    #allocation4 [shape = 's32[1]{0}', space=sflag, size = 0x4, scoped, tag = 'scoped memory for dan_forward.1']
    #allocation5 [shape = 's32[1]{0}', space=sflag, size = 0x4, scoped, tag = 'scoped memory for dan_forward.1']
    #allocation6 [shape = 'u8[32768]{0}', space=vmem, size = 0x8000, scoped, tag = 'input window, operand 1, single buffered']
    #allocation7 [shape = 's32[1]{0}', space=sflag, size = 0x4, scoped, tag = 'scoped memory for dan_forward.1']
    #allocation8 [shape = 'u8[4096]{0}', space=vmem, size = 0x1000, scoped, tag = 'output window, operand 0, single buffered']
    %8 = vsyncpa [#allocation4], 0
    %9 = vsyncpa [#allocation7], 0
    %10 = vsyncpa [#allocation5], 0
    // Predicated region
    $region2: #{dan_forward.1} parent=1 // pred_check
      _
    $region3: #{dan_forward.1} parent=1 // pred_check_branch
      %12 = sbr.rel (0) target = $region5
    $region4: #{dan_forward.1} parent=1 // pred_region
      %14 = vsyncadd [#allocation4], 0
      %s16 = sshll.u32 %s0, 4
      %s17 = int_to_ptr.hbm [resolvable:$true] %s16
      %s18 = sshll.u32 [#allocation3], 4
      %s19 = int_to_ptr.vmem [resolvable:$true] %s18
      %21 = dma.hbm_to_vmem [thread:$0]  %s17, 128, %s19, [#allocation4]
    $region5: #{dan_forward.1} parent=1 // pred_fallthru
      _
    // Predicated region
    $region6: #{dan_forward.1} parent=1 // pred_check
      _
    $region7: #{dan_forward.1} parent=1 // pred_check_branch
      %23 = sbr.rel (0) target = $region9
    $region8: #{dan_forward.1} parent=1 // pred_region
      %25 = vsyncadd [#allocation7], 0
      %s26 = sshll.u32 %s1, 4
      %s27 = int_to_ptr.hbm [resolvable:$true] %s26
      %s28 = sshll.u32 [#allocation6], 4
      %s29 = int_to_ptr.vmem [resolvable:$true] %s28
      %34 = dma.hbm_to_vmem [thread:$0]  %s27, 1024, %s29, [#allocation7], 64, 64, 4
    $region9: #{dan_forward.1} parent=1 // pred_fallthru
      _
    // Predicated region
    $region10: #{dan_forward.1} parent=1 // pred_check
      _
    $region11: #{dan_forward.1} parent=1 // pred_check_branch
      %36 = sbr.rel (0) target = $region13
    $region12: #{dan_forward.1} parent=1 // pred_region
      _
    $region13: #{dan_forward.1} parent=1 // pred_fallthru
      _
    // Predicated region
    $region14: #{dan_forward.1} parent=1 // pred_check
      _
    $region15: #{dan_forward.1} parent=1 // pred_check_branch
      %38 = sbr.rel (0) target = $region17
    $region16: #{dan_forward.1} parent=1 // pred_region
      %40 = dma.done [#allocation4], 128
    $region17: #{dan_forward.1} parent=1 // pred_fallthru
      _
    // Predicated region
    $region18: #{dan_forward.1} parent=1 // pred_check
      _
    $region19: #{dan_forward.1} parent=1 // pred_check_branch
      %42 = sbr.rel (0) target = $region21
    $region20: #{dan_forward.1} parent=1 // pred_region
      %44 = dma.done [#allocation7], 1024
    $region21: #{dan_forward.1} parent=1 // pred_fallthru
      _
    %p45 = scmp.eq.s32.totalorder 0, 0
    // Predicated region
    $region22: #{dan_forward.1} parent=1 // pred_check
      %p46 = pneg %p45
    $region23: #{dan_forward.1} parent=1 // pred_check_branch
      %48 = sbr.rel (%p46) target = $region25
    $region24: #{dan_forward.1} parent=1 // pred_region
      %v49 = vld [vmem:[%s2] sm:$0x1]
      %v51 = vperm.slane %v49, 0
      %53 = vst [vmem:[#allocation2] sm:$0xff] %v51
    $region25: #{dan_forward.1} parent=1 // pred_fallthru
      _
    %v54 = vld [vmem:[#allocation2] sm:$0xff]
    %v55 = vld [vmem:[#allocation3] sm:$0xff]
    %v56 = vpack.c.bf16 %v55, %v55
    %v57 = vld [vmem:[#allocation6] sm:$0xf]
    %v58 = vld [vmem:[#allocation6 + $0x4] sm:$0xf]
    %v59 = vld [vmem:[#allocation6 + $0x8] sm:$0xf]
    %v60 = vld [vmem:[#allocation6 + $0xc] sm:$0xf]
    %v61 = vld [vmem:[#allocation6 + $0x10] sm:$0xf]
    %v62 = vld [vmem:[#allocation6 + $0x14] sm:$0xf]
    %v63 = vld [vmem:[#allocation6 + $0x18] sm:$0xf]
    %v64 = vld [vmem:[#allocation6 + $0x1c] sm:$0xf]
    %v65 = vld [vmem:[#allocation6 + $0x20] sm:$0xf]
    %v66 = vld [vmem:[#allocation6 + $0x24] sm:$0xf]
    %v67 = vld [vmem:[#allocation6 + $0x28] sm:$0xf]
    %v68 = vld [vmem:[#allocation6 + $0x2c] sm:$0xf]
    %v69 = vld [vmem:[#allocation6 + $0x30] sm:$0xf]
    %v70 = vld [vmem:[#allocation6 + $0x34] sm:$0xf]
    %v71 = vld [vmem:[#allocation6 + $0x38] sm:$0xf]
    %v72 = vld [vmem:[#allocation6 + $0x3c] sm:$0xf]
    %v89 = vunpack.c.l.b16 %v57
    %v90 = vunpack.c.l.b16 %v58
    %v91 = vunpack.c.l.b16 %v59
    %v92 = vunpack.c.l.b16 %v60
    %v93 = vunpack.c.l.b16 %v61
    %v94 = vunpack.c.l.b16 %v62
    %v95 = vunpack.c.l.b16 %v63
    %v96 = vunpack.c.l.b16 %v64
    %v97 = vunpack.c.l.b16 %v65
    %v98 = vunpack.c.l.b16 %v66
    %v99 = vunpack.c.l.b16 %v67
    %v100 = vunpack.c.l.b16 %v68
    %v101 = vunpack.c.l.b16 %v69
    %v102 = vunpack.c.l.b16 %v70
    %v103 = vunpack.c.l.b16 %v71
    %v104 = vunpack.c.l.b16 %v72
    %v105 = vpack.c.b16 %v90, %v89
    %v106 = vpack.c.b16 %v92, %v91
    %v107 = vpack.c.b16 %v94, %v93
    %v108 = vpack.c.b16 %v96, %v95
    %v109 = vpack.c.b16 %v98, %v97
    %v110 = vpack.c.b16 %v100, %v99
    %v111 = vpack.c.b16 %v102, %v101
    %v112 = vpack.c.b16 %v104, %v103
    %121 = vmatpush.bf16.msra.mxu0 %v112
    %122 = vmatpush.bf16.msra.mxu0 %v111
    %123 = vmatpush.bf16.msra.mxu0 %v110
    %124 = vmatpush.bf16.msra.mxu0 %v109
    %125 = vmatpush.bf16.msra.mxu0 %v108
    %126 = vmatpush.bf16.msra.mxu0 %v107
    %127 = vmatpush.bf16.msra.mxu0 %v106
    %128 = vmatpush.bf16.msra.mxu0 %v105
    %129 = vmatmul.bf16.gmra.mxu0 %v56
    %v130 = vpop.f32.mrf.mxu0
    %v131 = vadd.f32 0.0, %v130
    %v132 = vpop.f32.mrf.mxu0
    %133 = vdwg.mxu0
    %v134 = vadd.f32 %v54, %v131
    %135 = vst [vmem:[#allocation2] sm:$0xff] %v134
    // Predicated region
    $region26: #{dan_forward.1} parent=1 // pred_check
      %p136 = pneg %p45
    $region27: #{dan_forward.1} parent=1 // pred_check_branch
      %138 = sbr.rel (%p136) target = $region29
    $region28: #{dan_forward.1} parent=1 // pred_region
      %v139 = vld [vmem:[#allocation2] sm:$0xff]
      %v140 = vsub.f32 0.0, %v139
      %v141 = vmul.f32 %v140, 1.442695
      %v142 = vpow.pop %v141
      %v143 = vadd.f32 %v142, 1.0
      %v144 = vrcp.pop %v143
      %145 = vst [vmem:[#allocation8] sm:$0xff] %v144
    $region29: #{dan_forward.1} parent=1 // pred_fallthru
      _
    // Predicated region
    $region30: #{dan_forward.1} parent=1 // pred_check
      _
    $region31: #{dan_forward.1} parent=1 // pred_check_branch
      %147 = sbr.rel (0) target = $region33
    $region32: #{dan_forward.1} parent=1 // pred_region
      %149 = vsyncadd [#allocation5], 0
      %s151 = sshll.u32 [#allocation8], 4
      %s152 = int_to_ptr.vmem [resolvable:$true] %s151
      %s153 = sshll.u32 %s3, 4
      %s154 = int_to_ptr.hbm [resolvable:$true] %s153
      %156 = dma.vmem_to_hbm [thread:$0]  %s152, 128, %s154, [#allocation5]
    $region33: #{dan_forward.1} parent=1 // pred_fallthru
      _
    // Predicated region
    $region34: #{dan_forward.1} parent=1 // pred_check
      _
    $region35: #{dan_forward.1} parent=1 // pred_check_branch
      %158 = sbr.rel (0) target = $region37
    $region36: #{dan_forward.1} parent=1 // pred_region
      %160 = dma.done [#allocation5], 128
    $region37: #{dan_forward.1} parent=1 // pred_fallthru
      _
    %161 = vsyncpa [#allocation4], 1
    %162 = vsyncpa [#allocation7], 1
    %163 = vsyncpa [#allocation5], 1

</llo_original>
